<compile_context>
chip_gen: v6e
topology: v6e:2x2x1
jax: 0.10.0
libtpu: 0.0.40
codegen_flags: <defaults>
</compile_context>

<pallas_src>
import functools

import jax
import jax.numpy as jnp
import numpy as np
from jax.experimental import pallas as pl
from jax.experimental.pallas import tpu as pltpu


def _round_up(n, m):
    return ((n + m - 1) // m) * m


def _detect_v7x():
    # v7x has 2 TensorCores per chip; CORE_PARALLEL shards grid steps across them.
    try:
        kind = jax.devices()[0].device_kind.lower()
        return ("v7" in kind) or ("7x" in kind)
    except Exception:
        return False


_IS_V7X = _detect_v7x()


def _mlp_kernel(x_ref, w1_ref, b1_ref, w2_ref, b2_ref, o_ref):
    # Cast f32 -> bf16 in VMEM right before the MXU dot; ~free (hidden under
    # the x DMA) and halves nothing in HBM (x is streamed once as f32).
    x = x_ref[...].astype(jnp.bfloat16)
    # hidden = relu(x @ W1_t + b1), f32 accumulate on the MXU.
    h = jnp.dot(x, w1_ref[...], preferred_element_type=jnp.float32)
    h = jnp.maximum(h + b1_ref[...], 0.0)                 # b1: [1, H] f32
    # Second layer (H -> 1) as an N=1 MXU contraction (idle MXU slot; keeps the
    # VPU/XLU epilogue off the critical path on v7x).
    out = jnp.dot(h, w2_ref[...], preferred_element_type=jnp.float32)  # [TM, 1]
    o_ref[...] = (out + b2_ref[0, 0]).astype(o_ref.dtype)  # b2 scalar from SMEM


def prepare_params(w1, b1, w2, b2, compute_dtype=jnp.bfloat16):
    """One-time parameter prep (outside the forward path).

    w1: [H, D], b1: [H], w2: [1, H], b2: [1]
    Returns (w1_t [D, H] compute_dtype, b1 [1, H] f32, w2 [H, 1] f32, b2 [1, 1] f32).
    """
    H, D = w1.shape
    w1_t = w1.T.astype(compute_dtype)                 # [D, H], done once
    b1_r = b1.reshape(1, H).astype(jnp.float32)
    w2_r = w2.reshape(-1, 1).astype(jnp.float32)      # [H, 1] -> MXU-friendly
    b2_r = b2.reshape(1, 1).astype(jnp.float32)
    return w1_t, b1_r, w2_r, b2_r


def _pick_block_b(B, D, itemsize):
    # Budget for the double-buffered f32 x stream; up to 4096 rows so the
    # ~0.35 us/step pipeline overhead is amortized to <10% of step time.
    budget = 8 * 1024 * 1024
    tm = budget // (2 * D * itemsize)
    tm = max(8, min(4096, (tm // 8) * 8))
    return min(tm, _round_up(B, 8))


def _vmem_limit_bytes(block_b, D, H):
    x_bytes = 2 * block_b * D * 4          # f32 x tile, double-buffered
    cast_tmp = block_b * D * 2             # bf16 cast of the tile
    h_tmp = 2 * block_b * H * 4            # f32 hidden + relu temps
    w_bytes = 2 * (D * H * 2 + H * 4 + H * 4)
    out_bytes = 2 * block_b * 4
    est = x_bytes + cast_tmp + h_tmp + w_bytes + out_bytes
    return min(max(est + (4 << 20), 16 << 20), 48 << 20)


def _forward(x, params, *, block_b=None):
    """x: [B, D] f32 -> [B, 1] f32.  params from prepare_params()."""
    w1_t, b1, w2, b2 = params
    D, H = w1_t.shape
    B, Dx = x.shape
    assert Dx == D, f"feature dim mismatch: x has {Dx}, W1 expects {D}"

    # Weight residency guard: W1 (double-buffered) must comfortably fit VMEM.
    if 2 * D * H * w1_t.dtype.itemsize > (12 << 20):
        # TODO(synk): tile H with a second "arbitrary" grid axis + VMEM accumulator
        raise NotImplementedError("W1 too large for VMEM residency; H tiling not implemented")

    if block_b is None:
        block_b = _pick_block_b(B, D, 4)
    num_blocks = pl.cdiv(B, block_b)       # partial last block is masked by Pallas

    # v7x: shard grid steps across both TensorCores; 1-TC chips use "parallel".
    if _IS_V7X and num_blocks >= 2:
        dim_sem = (pltpu.CORE_PARALLEL,)
    else:
        dim_sem = ("parallel",)

    cost = pl.CostEstimate(
        flops=2 * B * D * H + 2 * B * H,
        transcendentals=0,
        bytes_accessed=B * D * 4 + D * H * 2 + H * 4 + H * 4 + 4 + B * 4,
    )

    out = pl.pallas_call(
        _mlp_kernel,
        out_shape=jax.ShapeDtypeStruct((B, 1), jnp.float32),
        grid=(num_blocks,),
        in_specs=[
            pl.BlockSpec((block_b, D), lambda i: (i, 0)),    # x: streamed per tile (f32)
            pl.BlockSpec((D, H), lambda i: (0, 0)),          # W1_t: resident (bf16)
            pl.BlockSpec((1, H), lambda i: (0, 0)),          # b1: resident (f32)
            pl.BlockSpec((H, 1), lambda i: (0, 0)),          # w2 col: resident (f32)
            pl.BlockSpec(memory_space=pltpu.MemorySpace.SMEM),  # b2 scalar
        ],
        out_specs=pl.BlockSpec((block_b, 1), lambda i: (i, 0)),
        compiler_params=pltpu.CompilerParams(
            dimension_semantics=dim_sem,
            vmem_limit_bytes=_vmem_limit_bytes(block_b, D, H),
        ),
        cost_estimate=cost,
    )(x, w1_t, b1, w2, b2)
    return out


# Whole forward path (kernel + any surrounding glue) compiled as one program.
simple_discriminator = jax.jit(_forward, static_argnames=("block_b",))


def init_params(key, image_size):
    """Deterministic init matching nn.Linear shapes (uniform +-1/sqrt(fan_in))."""
    D = int(np.prod(image_size))
    H = D // 2
    k1, k2, k3, k4 = jax.random.split(key, 4)
    lim1 = 1.0 / np.sqrt(D)
    lim2 = 1.0 / np.sqrt(H)
    w1 = jax.random.uniform(k1, (H, D), jnp.float32, -lim1, lim1)
    b1 = jax.random.uniform(k2, (H,), jnp.float32, -lim1, lim1)
    w2 = jax.random.uniform(k3, (1, H), jnp.float32, -lim2, lim2)
    b2 = jax.random.uniform(k4, (1,), jnp.float32, -lim2, lim2)
    return w1, b1, w2, b2


if __name__ == "__main__":
    image_size = (16, 16)            # D = 256, hidden = 128, out = 1
    B = 2
    D = int(np.prod(image_size))

    key = jax.random.PRNGKey(0)
    kx, kp = jax.random.split(key)
    x = jax.random.normal(kx, (B, D), jnp.float32)
    w1, b1, w2, b2 = init_params(kp, image_size)
    params = prepare_params(w1, b1, w2, b2)          # one-time prep (transpose/cast)

    out = jax.block_until_ready(simple_discriminator(x, params))

    # Pure-JAX f32 reference (same semantics as the PyTorch forward).
    ref = jnp.maximum(x @ w1.T + b1, 0.0) @ w2.T + b2
    np.testing.assert_allclose(np.asarray(out), np.asarray(ref),
                               rtol=2e-2, atol=2e-2)  # bf16 inputs, f32 accumulate

    # Exercise multi-step grid + masked partial last block (50 = 3*16 + 2).
    x2 = jax.random.normal(jax.random.PRNGKey(1), (50, D), jnp.float32)
    out2 = jax.block_until_ready(simple_discriminator(x2, params, block_b=16))
    ref2 = jnp.maximum(x2 @ w1.T + b1, 0.0) @ w2.T + b2
    np.testing.assert_allclose(np.asarray(out2), np.asarray(ref2),
                               rtol=2e-2, atol=2e-2)

    print("KERNEL_OK")
</pallas_src>

<mosaic_0001>
module attributes {stable_mosaic.version = 11 : i64} {
  func.func @_mlp_kernel(%arg0: i32, %arg1: memref<8x256xf32, #tpu.memory_space<vmem>>, %arg2: memref<256x128xbf16, #tpu.memory_space<vmem>>, %arg3: memref<1x128xf32, #tpu.memory_space<vmem>>, %arg4: memref<128x1xf32, #tpu.memory_space<vmem>>, %arg5: memref<1x1xf32, #tpu.memory_space<smem>>, %arg6: memref<8x1xf32, #tpu.memory_space<vmem>>) attributes {dimension_semantics = [#tpu.dimension_semantics<parallel>], iteration_bounds = array<i64: 1>, scalar_prefetch = 0 : i64, scratch_operands = 0 : i64, tpu.core_type = #tpu.core_type<tc>, window_params = [{transform_indices = @transform_0, window_bounds = array<i64: 8, 256>}, {pipeline_mode = #tpu.pipeline_mode<synchronous>, transform_indices = @transform_1, window_bounds = array<i64: 256, 128>}, {pipeline_mode = #tpu.pipeline_mode<synchronous>, transform_indices = @transform_2, window_bounds = array<i64: 1, 128>}, {pipeline_mode = #tpu.pipeline_mode<synchronous>, transform_indices = @transform_3, window_bounds = array<i64: 128, 1>}, {transform_indices = @transform_4, window_bounds = array<i64: 1, 1>}, {transform_indices = @transform_5, window_bounds = array<i64: 8, 1>}]} {
    %c0 = arith.constant 0 : index
    %c0_0 = arith.constant 0 : index
    %0 = vector.load %arg1[%c0, %c0_0] : memref<8x256xf32, #tpu.memory_space<vmem>>, vector<8x256xf32>
    %1 = arith.truncf %0 : vector<8x256xf32> to vector<8x256xbf16>
    %c0_1 = arith.constant 0 : index
    %c0_2 = arith.constant 0 : index
    %2 = vector.load %arg2[%c0_1, %c0_2] : memref<256x128xbf16, #tpu.memory_space<vmem>>, vector<256x128xbf16>
    %cst = arith.constant dense<0.000000e+00> : vector<8x128xf32>
    %3 = tpu.matmul %1, %2, %cst {dimension_numbers = #tpu.dot_dimension_numbers<[1], [0], [0], [1], [0, 0, 1, 1], [], []>} : vector<8x256xbf16>, vector<256x128xbf16>, vector<8x128xf32> -> vector<8x128xf32>
    %c0_3 = arith.constant 0 : index
    %c0_4 = arith.constant 0 : index
    %4 = vector.load %arg3[%c0_3, %c0_4] : memref<1x128xf32, #tpu.memory_space<vmem>>, vector<1x128xf32>
    %5 = vector.broadcast %4 : vector<1x128xf32> to vector<8x128xf32>
    %6 = arith.addf %3, %5 : vector<8x128xf32>
    %cst_5 = arith.constant 0.000000e+00 : f32
    %7 = vector.broadcast %cst_5 : f32 to vector<8x128xf32>
    %8 = arith.maximumf %6, %7 : vector<8x128xf32>
    %c0_6 = arith.constant 0 : index
    %c0_7 = arith.constant 0 : index
    %9 = vector.load %arg4[%c0_6, %c0_7] : memref<128x1xf32, #tpu.memory_space<vmem>>, vector<128x1xf32>
    %cst_8 = arith.constant dense<0.000000e+00> : vector<8x1xf32>
    %10 = tpu.matmul %8, %9, %cst_8 {dimension_numbers = #tpu.dot_dimension_numbers<[1], [0], [0], [1], [0, 0, 1, 1], [], []>} : vector<8x128xf32>, vector<128x1xf32>, vector<8x1xf32> -> vector<8x1xf32>
    %c0_9 = arith.constant 0 : index
    %c0_10 = arith.constant 0 : index
    %11 = memref.load %arg5[%c0_9, %c0_10] : memref<1x1xf32, #tpu.memory_space<smem>>
    %12 = vector.broadcast %11 : f32 to vector<8x1xf32>
    %13 = arith.addf %10, %12 : vector<8x1xf32>
    %c0_11 = arith.constant 0 : index
    %c0_12 = arith.constant 0 : index
    %14 = vector.load %arg6[%c0_11, %c0_12] : memref<8x1xf32, #tpu.memory_space<vmem>>, vector<8x1xf32>
    tpu.vector_store %arg6[%c0_11, %c0_12], %13 {strides = array<i32>} : memref<8x1xf32, #tpu.memory_space<vmem>>, vector<8x1xf32>,
    return
  }
  func.func @transform_0(%arg0: i32) -> (i32, i32) {
    %c0_i32 = arith.constant 0 : i32
    %c0_i32_0 = arith.constant 0 : i32
    return %arg0, %c0_i32 : i32, i32
  }
  func.func @transform_1(%arg0: i32) -> (i32, i32) {
    %c0_i32 = arith.constant 0 : i32
    %c0_i32_0 = arith.constant 0 : i32
    %c0_i32_1 = arith.constant 0 : i32
    return %c0_i32, %c0_i32_0 : i32, i32
  }
  func.func @transform_2(%arg0: i32) -> (i32, i32) {
    %c0_i32 = arith.constant 0 : i32
    %c0_i32_0 = arith.constant 0 : i32
    %c0_i32_1 = arith.constant 0 : i32
    return %c0_i32, %c0_i32_0 : i32, i32
  }
  func.func @transform_3(%arg0: i32) -> (i32, i32) {
    %c0_i32 = arith.constant 0 : i32
    %c0_i32_0 = arith.constant 0 : i32
    %c0_i32_1 = arith.constant 0 : i32
    return %c0_i32, %c0_i32_0 : i32, i32
  }
  func.func @transform_4(%arg0: i32) -> (i32, i32) {
    %c0_i32 = arith.constant 0 : i32
    %c0_i32_0 = arith.constant 0 : i32
    %c0_i32_1 = arith.constant 0 : i32
    return %c0_i32, %c0_i32_0 : i32, i32
  }
  func.func @transform_5(%arg0: i32) -> (i32, i32) {
    %c0_i32 = arith.constant 0 : i32
    %c0_i32_0 = arith.constant 0 : i32
    return %arg0, %c0_i32 : i32, i32
  }
}

</mosaic_0001>

<llo_original>
// kernel: _forward.1
$region0: #{_forward.1}
  #allocation0 [shape = 'u32[]', space=smem, size = 0x4, offset = 0x4, fixed_abs, tag = 'smem constant byte address 0x4 - core index']
  #allocation1 [shape = 'u32[144,128]{1,0:T(1,128)}', space=vmem, size = 0x12000, scoped, tag = 'internal scratch']
  #allocation2 [shape = 'f32[1,1]{1,0:T(1,128)S(6)}', space=smem, size = 0x200, scoped, tag = 'scoped memory for _forward.1']
  %s0 = inlined_call_operand.vmem [shape: f32[2,256], index: 0, kind: input, shape index: {}]
  %s1 = inlined_call_operand.vmem [shape: bf16[256,128], index: 1, kind: input, shape index: {}]
  %s2 = inlined_call_operand.vmem [shape: f32[1,128], index: 2, kind: input, shape index: {}]
  %s3 = inlined_call_operand.vmem [shape: f32[128,1], index: 3, kind: input, shape index: {}]
  %s4 = inlined_call_operand.<no memory space> [shape: f32[1,1], index: 4, kind: input, shape index: {}]
  %s5 = inlined_call_operand.vmem [shape: f32[2,1], index: 5, kind: output, shape index: {}]
  %s6 = sld [smem:[#allocation0]]
  $region60: #{_forward.1} parent=0
    _
  %s8 = ssub.s32 1, %s6
  %s9 = scalar_select 0, %s8, %s6
  %10 = sst [smem:[#allocation2]] %s4
  $region1: #{_forward.1} parent=0
    #allocation3 [shape = 'u8[4096]{0}', space=vmem, size = 0x1000, scoped, tag = 'output window, operand 0, single buffered']
    // Predicated region
    $region2: #{_forward.1} parent=1 // pred_check
      _
    $region3: #{_forward.1} parent=1 // pred_check_branch
      %12 = sbr.rel (0) target = $region5
    $region4: #{_forward.1} parent=1 // pred_region
      _
    $region5: #{_forward.1} parent=1 // pred_fallthru
      _
    // Predicated region
    $region6: #{_forward.1} parent=1 // pred_check
      _
    $region7: #{_forward.1} parent=1 // pred_check_branch
      %14 = sbr.rel (0) target = $region9
    $region8: #{_forward.1} parent=1 // pred_region
      _
    $region9: #{_forward.1} parent=1 // pred_fallthru
      _
    // Predicated region
    $region10: #{_forward.1} parent=1 // pred_check
      _
    $region11: #{_forward.1} parent=1 // pred_check_branch
      %16 = sbr.rel (0) target = $region13
    $region12: #{_forward.1} parent=1 // pred_region
      _
    $region13: #{_forward.1} parent=1 // pred_fallthru
      _
    // Predicated region
    $region14: #{_forward.1} parent=1 // pred_check
      _
    $region15: #{_forward.1} parent=1 // pred_check_branch
      %18 = sbr.rel (0) target = $region17
    $region16: #{_forward.1} parent=1 // pred_region
      _
    $region17: #{_forward.1} parent=1 // pred_fallthru
      _
    // Predicated region
    $region18: #{_forward.1} parent=1 // pred_check
      _
    $region19: #{_forward.1} parent=1 // pred_check_branch
      %20 = sbr.rel (0) target = $region21
    $region20: #{_forward.1} parent=1 // pred_region
      _
    $region21: #{_forward.1} parent=1 // pred_fallthru
      _
    %v22 = vld [vmem:[%s0] sm:$0xf]
    %v23 = vld [vmem:[%s0 + $0x4] sm:$0xf]
    %v24 = vld [vmem:[%s0 + $0x8] sm:$0xf]
    %v25 = vld [vmem:[%s0 + $0xc] sm:$0xf]
    %v30 = vcombine.low %v22, %v23
    %v31 = vcombine.low %v24, %v25
    %v33 = vunpack.c.l.s4 1983009808
    %v34 = vunpack.c.0.s8 %v33
    %v35 = vlaneseq
    %v36 = vshrl.u32 %v35, 7
    %v37 = vsub.s32 %v34, %v36
    %v38 = vrot.slane %v30, %v37
    %v40 = vunpack.c.l.s4 1983009808
    %v41 = vunpack.c.0.s8 %v40
    %v42 = vlaneseq
    %v43 = vshrl.u32 %v42, 7
    %v44 = vsub.s32 %v41, %v43
    %v45 = vrot.slane %v31, %v44
    %v46 = vcombine.low %v38, %v45
    %v47 = vcombine.high %v38, %v45
    %v50 = vpack.c.bf16 %v46, %v46
    %v51 = vpack.c.bf16 %v47, %v47
    %v52 = vld [vmem:[%s1] sm:$0xf]
    %v53 = vld [vmem:[%s1 + $0x4] sm:$0xf]
    %v54 = vld [vmem:[%s1 + $0x8] sm:$0xf]
    %v55 = vld [vmem:[%s1 + $0xc] sm:$0xf]
    %v56 = vld [vmem:[%s1 + $0x10] sm:$0xf]
    %v57 = vld [vmem:[%s1 + $0x14] sm:$0xf]
    %v58 = vld [vmem:[%s1 + $0x18] sm:$0xf]
    %v59 = vld [vmem:[%s1 + $0x1c] sm:$0xf]
    %v60 = vld [vmem:[%s1 + $0x20] sm:$0xf]
    %v61 = vld [vmem:[%s1 + $0x24] sm:$0xf]
    %v62 = vld [vmem:[%s1 + $0x28] sm:$0xf]
    %v63 = vld [vmem:[%s1 + $0x2c] sm:$0xf]
    %v64 = vld [vmem:[%s1 + $0x30] sm:$0xf]
    %v65 = vld [vmem:[%s1 + $0x34] sm:$0xf]
    %v66 = vld [vmem:[%s1 + $0x38] sm:$0xf]
    %v67 = vld [vmem:[%s1 + $0x3c] sm:$0xf]
    %v68 = vld [vmem:[%s1 + $0x40] sm:$0xf]
    %v69 = vld [vmem:[%s1 + $0x44] sm:$0xf]
    %v70 = vld [vmem:[%s1 + $0x48] sm:$0xf]
    %v71 = vld [vmem:[%s1 + $0x4c] sm:$0xf]
    %v72 = vld [vmem:[%s1 + $0x50] sm:$0xf]
    %v73 = vld [vmem:[%s1 + $0x54] sm:$0xf]
    %v74 = vld [vmem:[%s1 + $0x58] sm:$0xf]
    %v75 = vld [vmem:[%s1 + $0x5c] sm:$0xf]
    %v76 = vld [vmem:[%s1 + $0x60] sm:$0xf]
    %v77 = vld [vmem:[%s1 + $0x64] sm:$0xf]
    %v78 = vld [vmem:[%s1 + $0x68] sm:$0xf]
    %v79 = vld [vmem:[%s1 + $0x6c] sm:$0xf]
    %v80 = vld [vmem:[%s1 + $0x70] sm:$0xf]
    %v81 = vld [vmem:[%s1 + $0x74] sm:$0xf]
    %v82 = vld [vmem:[%s1 + $0x78] sm:$0xf]
    %v83 = vld [vmem:[%s1 + $0x7c] sm:$0xf]
    %v84 = vld [vmem:[%s2] sm:$0x1]
    %v86 = vlaneseq
    %v87 = vshrl.u32 %v86, 7
    %v88 = vsub.s32 0, %v87
    %v89 = vrot.slane %v84, %v88
    %v123 = vunpack.c.l.b16 %v52
    %v124 = vunpack.c.l.b16 %v53
    %v125 = vunpack.c.l.b16 %v54
    %v126 = vunpack.c.l.b16 %v55
    %v127 = vunpack.c.l.b16 %v56
    %v128 = vunpack.c.l.b16 %v57
    %v129 = vunpack.c.l.b16 %v58
    %v130 = vunpack.c.l.b16 %v59
    %v131 = vunpack.c.l.b16 %v60
    %v132 = vunpack.c.l.b16 %v61
    %v133 = vunpack.c.l.b16 %v62
    %v134 = vunpack.c.l.b16 %v63
    %v135 = vunpack.c.l.b16 %v64
    %v136 = vunpack.c.l.b16 %v65
    %v137 = vunpack.c.l.b16 %v66
    %v138 = vunpack.c.l.b16 %v67
    %v139 = vunpack.c.l.b16 %v68
    %v140 = vunpack.c.l.b16 %v69
    %v141 = vunpack.c.l.b16 %v70
    %v142 = vunpack.c.l.b16 %v71
    %v143 = vunpack.c.l.b16 %v72
    %v144 = vunpack.c.l.b16 %v73
    %v145 = vunpack.c.l.b16 %v74
    %v146 = vunpack.c.l.b16 %v75
    %v147 = vunpack.c.l.b16 %v76
    %v148 = vunpack.c.l.b16 %v77
    %v149 = vunpack.c.l.b16 %v78
    %v150 = vunpack.c.l.b16 %v79
    %v151 = vunpack.c.l.b16 %v80
    %v152 = vunpack.c.l.b16 %v81
    %v153 = vunpack.c.l.b16 %v82
    %v154 = vunpack.c.l.b16 %v83
    %v155 = vpack.c.b16 %v124, %v123
    %v156 = vpack.c.b16 %v126, %v125
    %v157 = vpack.c.b16 %v128, %v127
    %v158 = vpack.c.b16 %v130, %v129
    %v159 = vpack.c.b16 %v132, %v131
    %v160 = vpack.c.b16 %v134, %v133
    %v161 = vpack.c.b16 %v136, %v135
    %v162 = vpack.c.b16 %v138, %v137
    %v163 = vpack.c.b16 %v140, %v139
    %v164 = vpack.c.b16 %v142, %v141
    %v165 = vpack.c.b16 %v144, %v143
    %v166 = vpack.c.b16 %v146, %v145
    %v167 = vpack.c.b16 %v148, %v147
    %v168 = vpack.c.b16 %v150, %v149
    %v169 = vpack.c.b16 %v152, %v151
    %v170 = vpack.c.b16 %v154, %v153
    %187 = vmatprep.subr.bf16.mxu0 0
    %188 = vmatpush1.bf16.msra.mxu0 %v162
    %189 = vmatprep.subr.bf16.mxu0 0
    %190 = vmatpush1.bf16.msra.mxu0 %v161
    %191 = vmatprep.subr.bf16.mxu0 0
    %192 = vmatpush1.bf16.msra.mxu0 %v160
    %193 = vmatprep.subr.bf16.mxu0 0
    %194 = vmatpush1.bf16.msra.mxu0 %v159
    %195 = vmatprep.subr.bf16.mxu0 0
    %196 = vmatpush1.bf16.msra.mxu0 %v158
    %197 = vmatprep.subr.bf16.mxu0 0
    %198 = vmatpush1.bf16.msra.mxu0 %v157
    %199 = vmatprep.subr.bf16.mxu0 0
    %200 = vmatpush1.bf16.msra.mxu0 %v156
    %201 = vmatprep.subr.bf16.mxu0 0
    %202 = vmatpush1.bf16.msra.mxu0 %v155
    %203 = vmatprep.subr.bf16.mxu0 0
    %204 = vmatpush2.bf16.msra.mxu0 %v170
    %205 = vmatprep.subr.bf16.mxu0 0
    %206 = vmatpush2.bf16.msra.mxu0 %v169
    %207 = vmatprep.subr.bf16.mxu0 0
    %208 = vmatpush2.bf16.msra.mxu0 %v168
    %209 = vmatprep.subr.bf16.mxu0 0
    %210 = vmatpush2.bf16.msra.mxu0 %v167
    %211 = vmatprep.subr.bf16.mxu0 0
    %212 = vmatpush2.bf16.msra.mxu0 %v166
    %213 = vmatprep.subr.bf16.mxu0 0
    %214 = vmatpush2.bf16.msra.mxu0 %v165
    %215 = vmatprep.subr.bf16.mxu0 0
    %216 = vmatpush2.bf16.msra.mxu0 %v164
    %217 = vmatprep.subr.bf16.mxu0 0
    %218 = vmatpush2.bf16.msra.mxu0 %v163
    %219 = vmatprep.mubr.bf16.mxu0 %v51
    %220 = vmatmul.mubr.bf16.gmra.mxu0 %v50
    %v221 = vpop.f32.mrf.mxu0
    %v222 = vadd.f32 %v89, %v221
    %v223 = vpop.f32.mrf.mxu0
    %v224 = vpop.f32.mrf.mxu0
    %v225 = vpop.f32.mrf.mxu0
    %226 = vdwg.mxu0
    %v227 = vmax.f32 %v222, 0.0
    %v228 = vld [vmem:[%s3] sm:$0xff]
    %v229 = vld [vmem:[%s3 + $0x8] sm:$0xff]
    %v230 = vld [vmem:[%s3 + $0x10] sm:$0xff]
    %v231 = vld [vmem:[%s3 + $0x18] sm:$0xff]
    %v232 = vld [vmem:[%s3 + $0x20] sm:$0xff]
    %v233 = vld [vmem:[%s3 + $0x28] sm:$0xff]
    %v234 = vld [vmem:[%s3 + $0x30] sm:$0xff]
    %v235 = vld [vmem:[%s3 + $0x38] sm:$0xff]
    %v236 = vld [vmem:[%s3 + $0x40] sm:$0xff]
    %v237 = vld [vmem:[%s3 + $0x48] sm:$0xff]
    %v238 = vld [vmem:[%s3 + $0x50] sm:$0xff]
    %v239 = vld [vmem:[%s3 + $0x58] sm:$0xff]
    %v240 = vld [vmem:[%s3 + $0x60] sm:$0xff]
    %v241 = vld [vmem:[%s3 + $0x68] sm:$0xff]
    %v242 = vld [vmem:[%s3 + $0x70] sm:$0xff]
    %v243 = vld [vmem:[%s3 + $0x78] sm:$0xff]
    %s244 = sld [smem:[#allocation2]]
    %v245 = vstv %s244
    %246 = vmatprep.subr.mxu0 0.0
    %247 = vmatpush1.msra.mxu0 %v243
    %248 = vmatprep.subr.mxu0 0.0
    %249 = vmatpush1.msra.mxu0 %v242
    %250 = vmatprep.subr.mxu0 0.0
    %251 = vmatpush1.msra.mxu0 %v241
    %252 = vmatprep.subr.mxu0 0.0
    %253 = vmatpush1.msra.mxu0 %v240
    %254 = vmatprep.subr.mxu0 0.0
    %255 = vmatpush1.msra.mxu0 %v239
    %256 = vmatprep.subr.mxu0 0.0
    %257 = vmatpush1.msra.mxu0 %v238
    %258 = vmatprep.subr.mxu0 0.0
    %259 = vmatpush1.msra.mxu0 %v237
    %260 = vmatprep.subr.mxu0 0.0
    %261 = vmatpush1.msra.mxu0 %v236
    %262 = vmatprep.subr.mxu0 0.0
    %263 = vmatpush1.msra.mxu0 %v235
    %264 = vmatprep.subr.mxu0 0.0
    %265 = vmatpush1.msra.mxu0 %v234
    %266 = vmatprep.subr.mxu0 0.0
    %267 = vmatpush1.msra.mxu0 %v233
    %268 = vmatprep.subr.mxu0 0.0
    %269 = vmatpush1.msra.mxu0 %v232
    %270 = vmatprep.subr.mxu0 0.0
    %271 = vmatpush1.msra.mxu0 %v231
    %272 = vmatprep.subr.mxu0 0.0
    %273 = vmatpush1.msra.mxu0 %v230
    %274 = vmatprep.subr.mxu0 0.0
    %275 = vmatpush1.msra.mxu0 %v229
    %276 = vmatprep.subr.mxu0 0.0
    %277 = vmatpush1.msra.mxu0 %v228
    %278 = vmatprep.subr.mxu0 0.0
    %279 = vmatpush2.msra.mxu0 0.0
    %280 = vmatprep.subr.mxu0 0.0
    %281 = vmatpush2.msra.mxu0 0.0
    %282 = vmatprep.subr.mxu0 0.0
    %283 = vmatpush2.msra.mxu0 0.0
    %284 = vmatprep.subr.mxu0 0.0
    %285 = vmatpush2.msra.mxu0 0.0
    %286 = vmatprep.subr.mxu0 0.0
    %287 = vmatpush2.msra.mxu0 0.0
    %288 = vmatprep.subr.mxu0 0.0
    %289 = vmatpush2.msra.mxu0 0.0
    %290 = vmatprep.subr.mxu0 0.0
    %291 = vmatpush2.msra.mxu0 0.0
    %292 = vmatprep.subr.mxu0 0.0
    %293 = vmatpush2.msra.mxu0 0.0
    %294 = vmatprep.subr.mxu0 0.0
    %295 = vmatpush2.msra.mxu0 0.0
    %296 = vmatprep.subr.mxu0 0.0
    %297 = vmatpush2.msra.mxu0 0.0
    %298 = vmatprep.subr.mxu0 0.0
    %299 = vmatpush2.msra.mxu0 0.0
    %300 = vmatprep.subr.mxu0 0.0
    %301 = vmatpush2.msra.mxu0 0.0
    %302 = vmatprep.subr.mxu0 0.0
    %303 = vmatpush2.msra.mxu0 0.0
    %304 = vmatprep.subr.mxu0 0.0
    %305 = vmatpush2.msra.mxu0 0.0
    %306 = vmatprep.subr.mxu0 0.0
    %307 = vmatpush2.msra.mxu0 0.0
    %308 = vmatprep.subr.mxu0 0.0
    %309 = vmatpush2.msra.mxu0 0.0
    %310 = vmatprep.mubr.f32.mxu0 0.0
    %311 = vmatmul.mubr.f32.gmra.mxu0 %v227
    %v312 = vpop.f32.mrf.mxu0
    %v313 = vadd.f32 %v245, %v312
    %v314 = vpop.f32.mrf.mxu0
    %315 = vdwg.mxu0
    %vm316 = vcmask 7168
    %317 = vst.msk [vmem:[#allocation3] sm:$0xff] %vm316, %v313
    // Predicated region
    $region22: #{_forward.1} parent=1 // pred_check
      _
    $region23: #{_forward.1} parent=1 // pred_check_branch
      %319 = sbr.rel (0) target = $region25
    $region24: #{_forward.1} parent=1 // pred_region
      // Predicated region
      $region26: #{_forward.1} parent=24 // pred_check
        _
      $region27: #{_forward.1} parent=24 // pred_check_branch
        %321 = sbr.rel (0) target = $region29
      $region28: #{_forward.1} parent=24 // pred_region
        // Predicated region
        $region30: #{_forward.1} parent=28 // pred_check
          _
        $region31: #{_forward.1} parent=28 // pred_check_branch
          %323 = sbr.rel target = $region33
        $region32: #{_forward.1} parent=28 // pred_region
          // Predicated region
          $region45: #{_forward.1} parent=32 // pred_check
            _
          $region46: #{_forward.1} parent=32 // pred_check_branch
            %339 = sbr.rel (0) target = $region48
          $region47: #{_forward.1} parent=32 // pred_region
            %s341 = ssub.s32 4, 1
            loop: start=0, step=1, limit=1
            $region49: #{_forward.1} parent=47 // loop_pre_header
              _
            $region50: #{_forward.1} parent=47 // loop_header
              %s343 = sphi 0, %s347
              %p344 = scmp.ge.s32.totalorder %s343, 1
              %s348 = sphi [#allocation3], [#allocation3]
              %s349 = sphi %s5, %s5
            $region51: #{_forward.1} parent=47 // loop_header_branch
              %346 = sbr.rel (%p344) target = $region55
            $region52: #{_forward.1} parent=47 // loop_body
              %v350 = vld [vmem:[%s348] sm:%s341]
              %351 = vst [vmem:[%s349] sm:%s341] %v350
            $region53: #{_forward.1} parent=47 // loop_footer
              %s347 = sadd.s32 1, %s343
            $region54: #{_forward.1} parent=47 // loop_footer_branch
              %342 = sbr.rel target = $region50
            $region55: #{_forward.1} parent=47 // loop_exit
              _
          $region48: #{_forward.1} parent=32 // pred_fallthru
            _
        $region33: #{_forward.1} parent=28 // pred_fallthru
          _
        // Predicated region
        $region34: #{_forward.1} parent=28 // pred_check
          _
        $region35: #{_forward.1} parent=28 // pred_check_branch
          %325 = sbr.rel (0) target = $region37
        $region36: #{_forward.1} parent=28 // pred_region
          %s327 = ssub.s32 4, 1
          loop: start=0, step=1, limit=1
          $region38: #{_forward.1} parent=36 // loop_pre_header
            _
          $region39: #{_forward.1} parent=36 // loop_header
            %s329 = sphi 0, %s333
            %p330 = scmp.ge.s32.totalorder %s329, 1
            %s334 = sphi [#allocation3], [#allocation3]
            %s335 = sphi %s5, %s5
          $region40: #{_forward.1} parent=36 // loop_header_branch
            %332 = sbr.rel (%p330) target = $region44
          $region41: #{_forward.1} parent=36 // loop_body
            %v336 = vld [vmem:[%s334] sm:%s327]
            %337 = vst [vmem:[%s335] sm:%s327] %v336
          $region42: #{_forward.1} parent=36 // loop_footer
            %s333 = sadd.s32 1, %s329
          $region43: #{_forward.1} parent=36 // loop_footer_branch
            %328 = sbr.rel target = $region39
          $region44: #{_forward.1} parent=36 // loop_exit
            _
        $region37: #{_forward.1} parent=28 // pred_fallthru
          _
      $region29: #{_forward.1} parent=24 // pred_fallthru
        _
      %352 = vnop
    $region25: #{_forward.1} parent=1 // pred_fallthru
      _
    // Predicated region
    $region56: #{_forward.1} parent=1 // pred_check
      _
    $region57: #{_forward.1} parent=1 // pred_check_branch
      %354 = sbr.rel (0) target = $region59
    $region58: #{_forward.1} parent=1 // pred_region
      _
    $region59: #{_forward.1} parent=1 // pred_fallthru
      _

</llo_original>
